<compile_context>
chip_gen: v5e
topology: v5e:2x2
jax: 0.10.0
libtpu: 0.0.40
codegen_flags: <defaults>
</compile_context>

<pallas_src>
import functools

import jax
import jax.numpy as jnp
from jax.experimental import pallas as pl
from jax.experimental.pallas import tpu as pltpu


def _make_slice_dma_kernel(batch, elem_offset, span):
    """Kernel factory: B direct HBM->HBM DMAs of `span` elements each."""

    def kernel(x_ref, o_ref, sem):
        # x_ref: (B, C*H*W) raw HBM ref; o_ref: (B, c_slice*H*W) raw HBM ref.
        copies = []
        for b in range(batch):
            cp = pltpu.make_async_copy(
                x_ref.at[b, pl.ds(elem_offset, span)],
                o_ref.at[b],
                sem.at[b],
            )
            cp.start()
            copies.append(cp)
        for cp in copies:
            cp.wait()

    return kernel


def _normalize_bounds(start, end, C):
    """Python-slicing-compatible normalization of (start, end) on the C axis."""
    if end == -1:
        end_ = C
    elif end < 0:
        end_ = C + end
    else:
        end_ = end
    start_ = C + start if start < 0 else start
    start_ = max(0, min(C, start_))
    end_ = max(0, min(C, end_))
    return start_, max(start_, end_)


@functools.partial(jax.jit, static_argnames=("start", "end"))
def get_part_features(x, *, start=0, end=-1):
    """Pallas TPU implementation of GetPartFeatures.forward (NCHW channel slice)."""
    B, C, H, W = x.shape
    start_, end_ = _normalize_bounds(start, end, C)
    c_slice = end_ - start_

    if c_slice == 0:
        # Empty slice: no data movement required.
        return jnp.zeros((B, 0, H, W), x.dtype)
    if c_slice == C:
        # Full slice: identity (PyTorch would return a view of the same data).
        return x

    HW = H * W
    span = c_slice * HW
    x2 = x.reshape(B, C * HW)  # metadata-only reshape; slice is B contiguous spans

    out2 = pl.pallas_call(
        _make_slice_dma_kernel(B, start_ * HW, span),
        out_shape=jax.ShapeDtypeStruct((B, span), x.dtype),
        in_specs=[pl.BlockSpec(memory_space=pl.ANY)],
        out_specs=pl.BlockSpec(memory_space=pl.ANY),
        scratch_shapes=[pltpu.SemaphoreType.DMA((B,))],
    )(x2)

    return out2.reshape(B, c_slice, H, W)


class GetPartFeaturesJAX:
    """JAX/Pallas port of the PyTorch GetPartFeatures module."""

    def __init__(self, start=0, end=-1):
        self.start = start
        self.end = end

    def __call__(self, x):
        return get_part_features(x, start=self.start, end=self.end)


if __name__ == "__main__":
    key = jax.random.PRNGKey(0)
    B, C, H, W = 2, 4, 16, 16
    x = jax.random.normal(key, (B, C, H, W), jnp.float32)

    # (start, end) cases: default end == -1, explicit end, odd/unaligned start,
    # full slice (identity shortcut) and empty slice (PyTorch-compatible).
    cases = [
        (1, -1),   # x[:, 1:, :, :]
        (0, 3),    # x[:, 0:3, :, :]
        (2, -1),   # x[:, 2:, :, :]
        (0, -1),   # full slice -> identity
        (3, 3),    # empty slice
    ]
    for start, end in cases:
        mod = GetPartFeaturesJAX(start=start, end=end)
        y = mod(x)
        jax.block_until_ready(y)
        ref = x[:, start:, :, :] if end == -1 else x[:, start:end, :, :]
        assert y.shape == ref.shape, (y.shape, ref.shape)
        assert bool(jnp.array_equal(y, ref)), f"mismatch for start={start}, end={end}"

    # bf16 with an odd, unaligned start — the DMA path is alignment-agnostic.
    xb = x.astype(jnp.bfloat16)
    yb = GetPartFeaturesJAX(start=1, end=3)(xb)
    jax.block_until_ready(yb)
    assert bool(jnp.array_equal(yb, xb[:, 1:3, :, :]))

    print("KERNEL_OK")
</pallas_src>

<mosaic_0001>
module attributes {stable_mosaic.version = 11 : i64} {
  func.func @kernel(%arg0: memref<2x1024xf32, #tpu.memory_space<any>>, %arg1: memref<2x768xf32, #tpu.memory_space<any>>, %arg2: memref<2x!tpu.dma_semaphore, #tpu.memory_space<semaphore_mem>>) attributes {dimension_semantics = [], scalar_prefetch = 0 : i64, scratch_operands = 1 : i64, tpu.core_type = #tpu.core_type<tc>} {
    %c0_i32 = arith.constant 0 : i32
    %c0_i32_0 = arith.constant 0 : i32
    %c0_i32_1 = arith.constant 0 : i32
    %c256_i32 = arith.constant 256 : i32
    %0 = tpu.memref_slice %arg0[%c0_i32, %c256_i32] : memref<2x1024xf32, #tpu.memory_space<any>> -> memref<1x768xf32, #tpu.memory_space<any>>
    %1 = tpu.memref_squeeze %0 : memref<1x768xf32, #tpu.memory_space<any>> -> memref<768xf32, #tpu.memory_space<any>>
    %c0_i32_2 = arith.constant 0 : i32
    %2 = tpu.memref_slice %arg1[%c0_i32_0, %c0_i32_2] : memref<2x768xf32, #tpu.memory_space<any>> -> memref<1x768xf32, #tpu.memory_space<any>>
    %3 = tpu.memref_squeeze %2 : memref<1x768xf32, #tpu.memory_space<any>> -> memref<768xf32, #tpu.memory_space<any>>
    %4 = tpu.memref_slice %arg2[%c0_i32_1] : memref<2x!tpu.dma_semaphore, #tpu.memory_space<semaphore_mem>> -> memref<1x!tpu.dma_semaphore, #tpu.memory_space<semaphore_mem>>
    %5 = tpu.memref_squeeze %4 : memref<1x!tpu.dma_semaphore, #tpu.memory_space<semaphore_mem>> -> memref<!tpu.dma_semaphore, #tpu.memory_space<semaphore_mem>>
    tpu.enqueue_dma source(%1 : memref<768xf32, #tpu.memory_space<any>>) target(%3 : memref<768xf32, #tpu.memory_space<any>>) target_semaphore(%5 : memref<!tpu.dma_semaphore, #tpu.memory_space<semaphore_mem>>)
    %c1_i32 = arith.constant 1 : i32
    %c1_i32_3 = arith.constant 1 : i32
    %c1_i32_4 = arith.constant 1 : i32
    %c256_i32_5 = arith.constant 256 : i32
    %6 = tpu.memref_slice %arg0[%c1_i32, %c256_i32_5] : memref<2x1024xf32, #tpu.memory_space<any>> -> memref<1x768xf32, #tpu.memory_space<any>>
    %7 = tpu.memref_squeeze %6 : memref<1x768xf32, #tpu.memory_space<any>> -> memref<768xf32, #tpu.memory_space<any>>
    %c0_i32_6 = arith.constant 0 : i32
    %8 = tpu.memref_slice %arg1[%c1_i32_3, %c0_i32_6] : memref<2x768xf32, #tpu.memory_space<any>> -> memref<1x768xf32, #tpu.memory_space<any>>
    %9 = tpu.memref_squeeze %8 : memref<1x768xf32, #tpu.memory_space<any>> -> memref<768xf32, #tpu.memory_space<any>>
    %10 = tpu.memref_slice %arg2[%c1_i32_4] : memref<2x!tpu.dma_semaphore, #tpu.memory_space<semaphore_mem>> -> memref<1x!tpu.dma_semaphore, #tpu.memory_space<semaphore_mem>>
    %11 = tpu.memref_squeeze %10 : memref<1x!tpu.dma_semaphore, #tpu.memory_space<semaphore_mem>> -> memref<!tpu.dma_semaphore, #tpu.memory_space<semaphore_mem>>
    tpu.enqueue_dma source(%7 : memref<768xf32, #tpu.memory_space<any>>) target(%9 : memref<768xf32, #tpu.memory_space<any>>) target_semaphore(%11 : memref<!tpu.dma_semaphore, #tpu.memory_space<semaphore_mem>>)
    %c0_i32_7 = arith.constant 0 : i32
    %c0_i32_8 = arith.constant 0 : i32
    %c0_i32_9 = arith.constant 0 : i32
    %c256_i32_10 = arith.constant 256 : i32
    %12 = tpu.memref_slice %arg0[%c0_i32_7, %c256_i32_10] : memref<2x1024xf32, #tpu.memory_space<any>> -> memref<1x768xf32, #tpu.memory_space<any>>
    %13 = tpu.memref_squeeze %12 : memref<1x768xf32, #tpu.memory_space<any>> -> memref<768xf32, #tpu.memory_space<any>>
    %c0_i32_11 = arith.constant 0 : i32
    %14 = tpu.memref_slice %arg1[%c0_i32_8, %c0_i32_11] : memref<2x768xf32, #tpu.memory_space<any>> -> memref<1x768xf32, #tpu.memory_space<any>>
    %15 = tpu.memref_squeeze %14 : memref<1x768xf32, #tpu.memory_space<any>> -> memref<768xf32, #tpu.memory_space<any>>
    %16 = tpu.memref_slice %arg2[%c0_i32_9] : memref<2x!tpu.dma_semaphore, #tpu.memory_space<semaphore_mem>> -> memref<1x!tpu.dma_semaphore, #tpu.memory_space<semaphore_mem>>
    %17 = tpu.memref_squeeze %16 : memref<1x!tpu.dma_semaphore, #tpu.memory_space<semaphore_mem>> -> memref<!tpu.dma_semaphore, #tpu.memory_space<semaphore_mem>>
    tpu.wait_dma2 semaphore(%17 : memref<!tpu.dma_semaphore, #tpu.memory_space<semaphore_mem>>) src(%13 : memref<768xf32, #tpu.memory_space<any>>) dst(%15 : memref<768xf32, #tpu.memory_space<any>>)
    %c1_i32_12 = arith.constant 1 : i32
    %c1_i32_13 = arith.constant 1 : i32
    %c1_i32_14 = arith.constant 1 : i32
    %c256_i32_15 = arith.constant 256 : i32
    %18 = tpu.memref_slice %arg0[%c1_i32_12, %c256_i32_15] : memref<2x1024xf32, #tpu.memory_space<any>> -> memref<1x768xf32, #tpu.memory_space<any>>
    %19 = tpu.memref_squeeze %18 : memref<1x768xf32, #tpu.memory_space<any>> -> memref<768xf32, #tpu.memory_space<any>>
    %c0_i32_16 = arith.constant 0 : i32
    %20 = tpu.memref_slice %arg1[%c1_i32_13, %c0_i32_16] : memref<2x768xf32, #tpu.memory_space<any>> -> memref<1x768xf32, #tpu.memory_space<any>>
    %21 = tpu.memref_squeeze %20 : memref<1x768xf32, #tpu.memory_space<any>> -> memref<768xf32, #tpu.memory_space<any>>
    %22 = tpu.memref_slice %arg2[%c1_i32_14] : memref<2x!tpu.dma_semaphore, #tpu.memory_space<semaphore_mem>> -> memref<1x!tpu.dma_semaphore, #tpu.memory_space<semaphore_mem>>
    %23 = tpu.memref_squeeze %22 : memref<1x!tpu.dma_semaphore, #tpu.memory_space<semaphore_mem>> -> memref<!tpu.dma_semaphore, #tpu.memory_space<semaphore_mem>>
    tpu.wait_dma2 semaphore(%23 : memref<!tpu.dma_semaphore, #tpu.memory_space<semaphore_mem>>) src(%19 : memref<768xf32, #tpu.memory_space<any>>) dst(%21 : memref<768xf32, #tpu.memory_space<any>>)
    return
  }
}

</mosaic_0001>

<llo_original>
// kernel: get_part_features.1
$region0: #{get_part_features.1}
  #allocation0 [shape = 'u32[]', space=smem, size = 0x4, offset = 0x4, fixed_abs, tag = 'smem constant byte address 0x4 - core index']
  #allocation1 [shape = 'u32[72,128]{1,0:T(1,128)}', space=vmem, size = 0x9000, scoped, tag = 'internal scratch']
  #allocation2 [shape = 's32[2]{0}', space=sflag, size = 0x8, scoped, tag = 'scratch operand']
  #allocation3 [shape = 's32[]', space=sflag, size = 0x4, offset = 0, fixed_abs, tag = 'sflag constant byte address 0x0 - dummy sync flag']
  #allocation4 [shape = 's32[]', space=sflag, size = 0x4, offset = 0, fixed_abs, tag = 'sflag constant byte address 0x0 - dummy sync flag']
  %s0 = inlined_call_operand.vmem [shape: f32[2,1024], index: 0, kind: input, shape index: {}]
  %s1 = inlined_call_operand.vmem [shape: f32[2,768], index: 1, kind: output, shape index: {}]
  %s2 = sld [smem:[#allocation0]]
  $region62: #{get_part_features.1} parent=0
    _
  %s4 = ssub.s32 1, %s2
  %s5 = scalar_select 0, %s4, %s2
  %s6 = scalar_lea.vmem %s0, 4
  // Predicated region
  $region2: #{get_part_features.1} parent=0 // pred_check
    _
  $region3: #{get_part_features.1} parent=0 // pred_check_branch
    %8 = sbr.rel target = $region5
  $region4: #{get_part_features.1} parent=0 // pred_region
    // Predicated region
    $region17: #{get_part_features.1} parent=4 // pred_check
      _
    $region18: #{get_part_features.1} parent=4 // pred_check_branch
      %34 = sbr.rel (0) target = $region20
    $region19: #{get_part_features.1} parent=4 // pred_region
      %s36 = ssub.s32 2, 1
      loop: start=0, step=1, limit=1
      $region21: #{get_part_features.1} parent=19 // loop_pre_header
        _
      $region22: #{get_part_features.1} parent=19 // loop_header
        %s38 = sphi 0, %s42
        %p39 = scmp.ge.s32.totalorder %s38, 1
        %s43 = sphi %s6, %s6
        %s44 = sphi %s1, %s1
      $region23: #{get_part_features.1} parent=19 // loop_header_branch
        %41 = sbr.rel (%p39) target = $region27
      $region24: #{get_part_features.1} parent=19 // loop_body
        %v45 = vld [vmem:[%s43] sm:%s36]
        %46 = vst [vmem:[%s44] sm:%s36] %v45
        %v47 = vld [vmem:[%s43 + $0x2] sm:%s36]
        %48 = vst [vmem:[%s44 + $0x2] sm:%s36] %v47
        %v49 = vld [vmem:[%s43 + $0x4] sm:%s36]
        %50 = vst [vmem:[%s44 + $0x4] sm:%s36] %v49
        %v51 = vld [vmem:[%s43 + $0x6] sm:%s36]
        %52 = vst [vmem:[%s44 + $0x6] sm:%s36] %v51
        %v53 = vld [vmem:[%s43 + $0x8] sm:%s36]
        %54 = vst [vmem:[%s44 + $0x8] sm:%s36] %v53
        %v55 = vld [vmem:[%s43 + $0xa] sm:%s36]
        %56 = vst [vmem:[%s44 + $0xa] sm:%s36] %v55
      $region25: #{get_part_features.1} parent=19 // loop_footer
        %s42 = sadd.s32 1, %s38
      $region26: #{get_part_features.1} parent=19 // loop_footer_branch
        %37 = sbr.rel target = $region22
      $region27: #{get_part_features.1} parent=19 // loop_exit
        _
    $region20: #{get_part_features.1} parent=4 // pred_fallthru
      _
  $region5: #{get_part_features.1} parent=0 // pred_fallthru
    _
  // Predicated region
  $region6: #{get_part_features.1} parent=0 // pred_check
    _
  $region7: #{get_part_features.1} parent=0 // pred_check_branch
    %10 = sbr.rel (0) target = $region9
  $region8: #{get_part_features.1} parent=0 // pred_region
    %s12 = ssub.s32 2, 1
    loop: start=0, step=1, limit=1
    $region10: #{get_part_features.1} parent=8 // loop_pre_header
      _
    $region11: #{get_part_features.1} parent=8 // loop_header
      %s14 = sphi 0, %s18
      %p15 = scmp.ge.s32.totalorder %s14, 1
      %s19 = sphi %s6, %s6
      %s20 = sphi %s1, %s1
    $region12: #{get_part_features.1} parent=8 // loop_header_branch
      %17 = sbr.rel (%p15) target = $region16
    $region13: #{get_part_features.1} parent=8 // loop_body
      %v21 = vld [vmem:[%s19] sm:%s12]
      %22 = vst [vmem:[%s20] sm:%s12] %v21
      %v23 = vld [vmem:[%s19 + $0x2] sm:%s12]
      %24 = vst [vmem:[%s20 + $0x2] sm:%s12] %v23
      %v25 = vld [vmem:[%s19 + $0x4] sm:%s12]
      %26 = vst [vmem:[%s20 + $0x4] sm:%s12] %v25
      %v27 = vld [vmem:[%s19 + $0x6] sm:%s12]
      %28 = vst [vmem:[%s20 + $0x6] sm:%s12] %v27
      %v29 = vld [vmem:[%s19 + $0x8] sm:%s12]
      %30 = vst [vmem:[%s20 + $0x8] sm:%s12] %v29
      %v31 = vld [vmem:[%s19 + $0xa] sm:%s12]
      %32 = vst [vmem:[%s20 + $0xa] sm:%s12] %v31
    $region14: #{get_part_features.1} parent=8 // loop_footer
      %s18 = sadd.s32 1, %s14
    $region15: #{get_part_features.1} parent=8 // loop_footer_branch
      %13 = sbr.rel target = $region11
    $region16: #{get_part_features.1} parent=8 // loop_exit
      _
  $region9: #{get_part_features.1} parent=0 // pred_fallthru
    _
  // Predicated region
  $region28: #{get_part_features.1} parent=0 // pred_check
    _
  $region29: #{get_part_features.1} parent=0 // pred_check_branch
    %59 = sbr.rel (0) target = $region31
  $region30: #{get_part_features.1} parent=0 // pred_region
    %60 = vsyncadd [#allocation2], 96
  $region31: #{get_part_features.1} parent=0 // pred_fallthru
    _
  %s61 = scalar_lea.vmem %s0, 5
  %s62 = scalar_lea.vmem %s1, 1
  %s63 = scalar_lea.sflag [#allocation2], 1
  // Predicated region
  $region32: #{get_part_features.1} parent=0 // pred_check
    _
  $region33: #{get_part_features.1} parent=0 // pred_check_branch
    %65 = sbr.rel target = $region35
  $region34: #{get_part_features.1} parent=0 // pred_region
    // Predicated region
    $region47: #{get_part_features.1} parent=34 // pred_check
      _
    $region48: #{get_part_features.1} parent=34 // pred_check_branch
      %91 = sbr.rel (0) target = $region50
    $region49: #{get_part_features.1} parent=34 // pred_region
      %s93 = ssub.s32 2, 1
      loop: start=0, step=1, limit=1
      $region51: #{get_part_features.1} parent=49 // loop_pre_header
        _
      $region52: #{get_part_features.1} parent=49 // loop_header
        %s95 = sphi 0, %s99
        %p96 = scmp.ge.s32.totalorder %s95, 1
        %s100 = sphi %s61, %s61
        %s101 = sphi %s62, %s62
      $region53: #{get_part_features.1} parent=49 // loop_header_branch
        %98 = sbr.rel (%p96) target = $region57
      $region54: #{get_part_features.1} parent=49 // loop_body
        %v102 = vld [vmem:[%s100] sm:%s93]
        %103 = vst [vmem:[%s101] sm:%s93] %v102
        %v104 = vld [vmem:[%s100 + $0x2] sm:%s93]
        %105 = vst [vmem:[%s101 + $0x2] sm:%s93] %v104
        %v106 = vld [vmem:[%s100 + $0x4] sm:%s93]
        %107 = vst [vmem:[%s101 + $0x4] sm:%s93] %v106
        %v108 = vld [vmem:[%s100 + $0x6] sm:%s93]
        %109 = vst [vmem:[%s101 + $0x6] sm:%s93] %v108
        %v110 = vld [vmem:[%s100 + $0x8] sm:%s93]
        %111 = vst [vmem:[%s101 + $0x8] sm:%s93] %v110
        %v112 = vld [vmem:[%s100 + $0xa] sm:%s93]
        %113 = vst [vmem:[%s101 + $0xa] sm:%s93] %v112
      $region55: #{get_part_features.1} parent=49 // loop_footer
        %s99 = sadd.s32 1, %s95
      $region56: #{get_part_features.1} parent=49 // loop_footer_branch
        %94 = sbr.rel target = $region52
      $region57: #{get_part_features.1} parent=49 // loop_exit
        _
    $region50: #{get_part_features.1} parent=34 // pred_fallthru
      _
  $region35: #{get_part_features.1} parent=0 // pred_fallthru
    _
  // Predicated region
  $region36: #{get_part_features.1} parent=0 // pred_check
    _
  $region37: #{get_part_features.1} parent=0 // pred_check_branch
    %67 = sbr.rel (0) target = $region39
  $region38: #{get_part_features.1} parent=0 // pred_region
    %s69 = ssub.s32 2, 1
    loop: start=0, step=1, limit=1
    $region40: #{get_part_features.1} parent=38 // loop_pre_header
      _
    $region41: #{get_part_features.1} parent=38 // loop_header
      %s71 = sphi 0, %s75
      %p72 = scmp.ge.s32.totalorder %s71, 1
      %s76 = sphi %s61, %s61
      %s77 = sphi %s62, %s62
    $region42: #{get_part_features.1} parent=38 // loop_header_branch
      %74 = sbr.rel (%p72) target = $region46
    $region43: #{get_part_features.1} parent=38 // loop_body
      %v78 = vld [vmem:[%s76] sm:%s69]
      %79 = vst [vmem:[%s77] sm:%s69] %v78
      %v80 = vld [vmem:[%s76 + $0x2] sm:%s69]
      %81 = vst [vmem:[%s77 + $0x2] sm:%s69] %v80
      %v82 = vld [vmem:[%s76 + $0x4] sm:%s69]
      %83 = vst [vmem:[%s77 + $0x4] sm:%s69] %v82
      %v84 = vld [vmem:[%s76 + $0x6] sm:%s69]
      %85 = vst [vmem:[%s77 + $0x6] sm:%s69] %v84
      %v86 = vld [vmem:[%s76 + $0x8] sm:%s69]
      %87 = vst [vmem:[%s77 + $0x8] sm:%s69] %v86
      %v88 = vld [vmem:[%s76 + $0xa] sm:%s69]
      %89 = vst [vmem:[%s77 + $0xa] sm:%s69] %v88
    $region44: #{get_part_features.1} parent=38 // loop_footer
      %s75 = sadd.s32 1, %s71
    $region45: #{get_part_features.1} parent=38 // loop_footer_branch
      %70 = sbr.rel target = $region41
    $region46: #{get_part_features.1} parent=38 // loop_exit
      _
  $region39: #{get_part_features.1} parent=0 // pred_fallthru
    _
  // Predicated region
  $region58: #{get_part_features.1} parent=0 // pred_check
    _
  $region59: #{get_part_features.1} parent=0 // pred_check_branch
    %116 = sbr.rel (0) target = $region61
  $region60: #{get_part_features.1} parent=0 // pred_region
    %117 = vsyncadd %s63, 96
  $region61: #{get_part_features.1} parent=0 // pred_fallthru
    _
  %119 = dma.done [#allocation2], 96
  %121 = dma.done %s63, 96
  %122 = vsyncmov [#allocation2]
  %s123 = vpop.sfrf %122
  %p124 = scmp.eq.s32.totalorder %s123, 0
  %p125 = pneg %p124
  %127 = shalt.err (%p125)
  %s128 = scalar_lea.sflag [#allocation2], 1
  %129 = vsyncmov %s128
  %s130 = vpop.sfrf %129
  %p131 = scmp.eq.s32.totalorder %s130, 0
  %p132 = pneg %p131
  %134 = shalt.err (%p132)

</llo_original>
